<compile_context>
chip_gen: v5e
topology: v5e:2x2
jax: 0.10.0
libtpu: 0.0.40
codegen_flags: <defaults>
</compile_context>

<pallas_src>
import math
from functools import partial

import jax
import jax.numpy as jnp
from jax import lax
from jax.experimental import pallas as pl
from jax.experimental.pallas import tpu as pltpu


def _round_up(x, m):
    return (x + m - 1) // m * m


# ---------------- Pallas kernel 1: temporal conv + BN partial stats --------

def _conv_bn_stats_kernel(w_ref, b_ref, x_ref, y_ref, st_ref, *,
                          K, stride, V, TV, TVp):
    # w_ref : (K, Co_p, Ci_p)          resident weights, one (Co_p,Ci_p) per tap
    # b_ref : (Co_p, 1)                resident bias
    # x_ref : (1, stride, Ci_p, Lx)    padded / phase-split / flattened x
    # y_ref : (1, Co_p, TVp)           conv output (lane-dense)
    # st_ref: (1, Co_p, 2)             per-batch partial [sum, sum_sq] per chan
    Co_p = w_ref.shape[1]
    acc = jnp.zeros((Co_p, TVp), dtype=jnp.float32)

    # In-VMEM temporal unfold: K shifted slices -> K accumulated MXU matmuls.
    phases = [x_ref[0, p] for p in range(stride)]            # each (Ci_p, Lx)
    for k in range(K):
        off = (k // stride) * V                              # static offset
        xk = phases[k % stride][:, off:off + TVp]            # (Ci_p, TVp)
        acc = acc + jnp.dot(w_ref[k], xk,
                            preferred_element_type=jnp.float32)
    acc = acc + b_ref[...]                                   # bias broadcast
    y_ref[0] = acc.astype(y_ref.dtype)

    # Single-pass BN partial statistics; mask lane-padding cols [TV, TVp).
    if TVp != TV:
        lane = lax.broadcasted_iota(jnp.int32, (1, TVp), 1)
        acc = acc * (lane < TV).astype(jnp.float32)
    ssum = jnp.sum(acc, axis=1, keepdims=True)               # (Co_p, 1)
    ssq = jnp.sum(acc * acc, axis=1, keepdims=True)          # (Co_p, 1)
    st_ref[0] = jnp.concatenate([ssum, ssq], axis=1)         # (Co_p, 2)


# ---------------- Pallas kernel 2: BN normalize (tiled elementwise) --------

def _bn_apply_kernel(y_ref, a_ref, b_ref, o_ref):
    # y_ref/o_ref: (1, Co_p, tile_tv); a_ref/b_ref: (Co_p, 1)
    o_ref[...] = (y_ref[...] * a_ref[...][None]
                  + b_ref[...][None]).astype(o_ref.dtype)


# --------------------------------- wrapper ---------------------------------

def unit_tcn_forward(x, w, bias, gamma, beta, *, kernel_size=9, stride=1):
    """x: (N, C_in, T, V) f32; w: (C_out, C_in, K, 1); bias/gamma/beta: (C_out,)."""
    N, C_in, T, V = x.shape
    C_out = w.shape[0]
    K = kernel_size
    s = stride
    pad = (K - 1) // 2
    T_out = (T + 2 * pad - K) // s + 1
    TV = T_out * V

    # Alignment padding (8-aligned sublane dims, 128-multiple lane dim).
    Co_p = _round_up(C_out, 8)
    Ci_p = _round_up(C_in, 8)
    TVp = _round_up(TV, 128)

    # ---- glue (no im2col): pad, split temporal axis into stride phases,
    #      flatten (T_phase, V) so in-kernel shifts are static lane slices ----
    T_ph = T_out + (K - 1) // s           # rows per phase
    o_max = ((K - 1) // s) * V            # largest in-kernel slice offset
    Lx = o_max + TVp                      # flattened length (>= T_ph*V)

    xp = jnp.pad(x, ((0, 0), (0, Ci_p - C_in), (0, 0), (0, 0)))
    back = max(0, T_ph * s - (T + pad))
    xp = jnp.pad(xp, ((0, 0), (0, 0), (pad, back), (0, 0)))[:, :, :T_ph * s, :]
    xph = xp.reshape(N, Ci_p, T_ph, s, V).transpose(0, 3, 1, 2, 4)
    xph = xph.reshape(N, s, Ci_p, T_ph * V)
    xph = jnp.pad(xph, ((0, 0), (0, 0), (0, 0), (0, Lx - T_ph * V)))

    wp = jnp.pad(w[..., 0], ((0, Co_p - C_out), (0, Ci_p - C_in), (0, 0)))
    w_r = jnp.transpose(wp, (2, 0, 1))                       # (K, Co_p, Ci_p)
    b_r = jnp.pad(bias, (0, Co_p - C_out)).reshape(Co_p, 1)

    # ---- VMEM budgets (double-buffered blocks + working set, with headroom) --
    x_blk = s * Ci_p * Lx * 4
    y_blk = Co_p * TVp * 4
    w_byt = (K * Co_p * Ci_p + Co_p) * 4
    conv_need = 2 * x_blk + 2 * y_blk + 3 * y_blk + 2 * w_byt + 2 * Co_p * 2 * 4
    vmem_conv = int(min(110 * 2**20, max(32 * 2**20, 2 * conv_need)))

    # ---- kernel 1: conv-as-matmul with in-VMEM unfold + BN partial stats ----
    conv_out, stats = pl.pallas_call(
        partial(_conv_bn_stats_kernel, K=K, stride=s, V=V, TV=TV, TVp=TVp),
        out_shape=(jax.ShapeDtypeStruct((N, Co_p, TVp), jnp.float32),
                   jax.ShapeDtypeStruct((N, Co_p, 2), jnp.float32)),
        grid_spec=pltpu.PrefetchScalarGridSpec(
            num_scalar_prefetch=0,
            grid=(N,),
            in_specs=[
                pl.BlockSpec((K, Co_p, Ci_p), lambda n: (0, 0, 0)),
                pl.BlockSpec((Co_p, 1), lambda n: (0, 0)),
                pl.BlockSpec((1, s, Ci_p, Lx), lambda n: (n, 0, 0, 0)),
            ],
            out_specs=[
                pl.BlockSpec((1, Co_p, TVp), lambda n: (n, 0, 0)),
                pl.BlockSpec((1, Co_p, 2), lambda n: (n, 0, 0)),
            ],
        ),
        compiler_params=pltpu.CompilerParams(
            dimension_semantics=("parallel",),
            vmem_limit_bytes=vmem_conv),
    )(w_r, b_r, xph)

    # ---- finalize BN stats (tiny (C,) math in plain JAX) ----
    cnt = jnp.float32(N * TV)
    ssum = jnp.sum(stats[:, :, 0], axis=0)
    ssq = jnp.sum(stats[:, :, 1], axis=0)
    mean = ssum / cnt
    var = jnp.maximum(ssq / cnt - mean * mean, 0.0)
    inv = lax.rsqrt(var + 1e-5)
    g_p = jnp.pad(gamma, (0, Co_p - C_out))
    bt_p = jnp.pad(beta, (0, Co_p - C_out))
    scale = (g_p * inv).reshape(Co_p, 1)
    shift = (bt_p - mean * g_p * inv).reshape(Co_p, 1)

    # ---- kernel 2: tiled elementwise normalize (y*scale + shift) ----
    tile_tv = 128
    for cand in (2048, 1024, 512, 256, 128):
        if TVp % cand == 0:
            tile_tv = cand
            break
    bn_need = 4 * Co_p * tile_tv * 4 + 4 * Co_p * 4
    vmem_bn = int(min(110 * 2**20, max(32 * 2**20, 2 * bn_need)))

    bn_out = pl.pallas_call(
        _bn_apply_kernel,
        out_shape=jax.ShapeDtypeStruct((N, Co_p, TVp), jnp.float32),
        grid_spec=pltpu.PrefetchScalarGridSpec(
            num_scalar_prefetch=0,
            grid=(N, TVp // tile_tv),
            in_specs=[
                pl.BlockSpec((1, Co_p, tile_tv), lambda n, j: (n, 0, j)),
                pl.BlockSpec((Co_p, 1), lambda n, j: (0, 0)),
                pl.BlockSpec((Co_p, 1), lambda n, j: (0, 0)),
            ],
            out_specs=pl.BlockSpec((1, Co_p, tile_tv), lambda n, j: (n, 0, j)),
        ),
        compiler_params=pltpu.CompilerParams(
            dimension_semantics=("parallel", "parallel"),
            vmem_limit_bytes=vmem_bn),
    )(conv_out, scale, shift)

    return bn_out[:, :C_out, :TV].reshape(N, C_out, T_out, V)


# ---------------------------- pure-JAX reference ----------------------------

def unit_tcn_reference(x, w, bias, gamma, beta, *, kernel_size=9, stride=1):
    pad = (kernel_size - 1) // 2
    y = lax.conv_general_dilated(
        x, w, window_strides=(stride, 1), padding=((pad, pad), (0, 0)),
        dimension_numbers=("NCHW", "OIHW", "NCHW"))
    y = y + bias.reshape(1, -1, 1, 1)
    mean = jnp.mean(y, axis=(0, 2, 3), keepdims=True)
    var = jnp.mean((y - mean) ** 2, axis=(0, 2, 3), keepdims=True)
    return (y - mean) * lax.rsqrt(var + 1e-5) * gamma.reshape(1, -1, 1, 1) \
        + beta.reshape(1, -1, 1, 1)


# --------------------------------- main -------------------------------------

if __name__ == "__main__":
    # small shapes consistent with unit_tcn: x is (N, C_in, T, V)
    N, C_in, C_out, T, V = 2, 4, 8, 16, 16
    K, stride = 9, 1

    key = jax.random.PRNGKey(0)
    kx, kw = jax.random.split(key)

    x = jax.random.normal(kx, (N, C_in, T, V), dtype=jnp.float32)

    # conv_init: kaiming_normal_(mode='fan_out') -> std = sqrt(2 / fan_out),
    # fan_out = C_out * K * 1 ; bias init to 0.
    fan_out = C_out * K * 1
    std = math.sqrt(2.0 / fan_out)
    w = jax.random.normal(kw, (C_out, C_in, K, 1), dtype=jnp.float32) * std
    bias = jnp.zeros((C_out,), dtype=jnp.float32)

    # bn_init(bn, 1): weight = 1, bias = 0
    gamma = jnp.ones((C_out,), dtype=jnp.float32)
    beta = jnp.zeros((C_out,), dtype=jnp.float32)

    fwd = jax.jit(partial(unit_tcn_forward, kernel_size=K, stride=stride))
    out = fwd(x, w, bias, gamma, beta)
    out = jax.block_until_ready(out)

    ref = unit_tcn_reference(x, w, bias, gamma, beta,
                             kernel_size=K, stride=stride)
    assert out.shape == (N, C_out, T, V), out.shape
    assert jnp.allclose(out, ref, rtol=1e-4, atol=1e-4), \
        float(jnp.max(jnp.abs(out - ref)))

    # TODO(synk): ReLU is defined in the module but not used in forward(), so
    # it is intentionally not applied here.
    print("KERNEL_OK")
</pallas_src>

<mosaic_0001>
module attributes {stable_mosaic.version = 11 : i64} {
  func.func @_bn_apply_kernel(%arg0: i32, %arg1: i32, %arg2: memref<1x8x256xf32, #tpu.memory_space<vmem>>, %arg3: memref<8x1xf32, #tpu.memory_space<vmem>>, %arg4: memref<8x1xf32, #tpu.memory_space<vmem>>, %arg5: memref<1x8x256xf32, #tpu.memory_space<vmem>>) attributes {dimension_semantics = [#tpu.dimension_semantics<parallel>, #tpu.dimension_semantics<parallel>], iteration_bounds = array<i64: 2, 1>, scalar_prefetch = 0 : i64, scratch_operands = 0 : i64, tpu.core_type = #tpu.core_type<tc>, window_params = [{transform_indices = @transform_0, window_bounds = array<i64: 1, 8, 256>}, {pipeline_mode = #tpu.pipeline_mode<synchronous>, transform_indices = @transform_1, window_bounds = array<i64: 8, 1>}, {pipeline_mode = #tpu.pipeline_mode<synchronous>, transform_indices = @transform_2, window_bounds = array<i64: 8, 1>}, {transform_indices = @transform_3, window_bounds = array<i64: 1, 8, 256>}]} {
    %c0 = arith.constant 0 : index
    %c0_0 = arith.constant 0 : index
    %c0_1 = arith.constant 0 : index
    %0 = vector.load %arg2[%c0, %c0_0, %c0_1] : memref<1x8x256xf32, #tpu.memory_space<vmem>>, vector<1x8x256xf32>
    %c0_2 = arith.constant 0 : index
    %c0_3 = arith.constant 0 : index
    %1 = vector.load %arg3[%c0_2, %c0_3] : memref<8x1xf32, #tpu.memory_space<vmem>>, vector<8x1xf32>
    %2 = vector.shape_cast %1 : vector<8x1xf32> to vector<1x8x1xf32>
    %3 = vector.broadcast %2 : vector<1x8x1xf32> to vector<1x8x256xf32>
    %4 = arith.mulf %0, %3 : vector<1x8x256xf32>
    %c0_4 = arith.constant 0 : index
    %c0_5 = arith.constant 0 : index
    %5 = vector.load %arg4[%c0_4, %c0_5] : memref<8x1xf32, #tpu.memory_space<vmem>>, vector<8x1xf32>
    %6 = vector.shape_cast %5 : vector<8x1xf32> to vector<1x8x1xf32>
    %7 = vector.broadcast %6 : vector<1x8x1xf32> to vector<1x8x256xf32>
    %8 = arith.addf %4, %7 : vector<1x8x256xf32>
    %c0_6 = arith.constant 0 : index
    %c0_7 = arith.constant 0 : index
    %c0_8 = arith.constant 0 : index
    %9 = vector.load %arg5[%c0_6, %c0_7, %c0_8] : memref<1x8x256xf32, #tpu.memory_space<vmem>>, vector<1x8x256xf32>
    tpu.vector_store %arg5[%c0_6, %c0_7, %c0_8], %8 {strides = array<i32>} : memref<1x8x256xf32, #tpu.memory_space<vmem>>, vector<1x8x256xf32>,
    return
  }
  func.func @transform_0(%arg0: i32, %arg1: i32) -> (i32, i32, i32) {
    %c0_i32 = arith.constant 0 : i32
    %c0_i32_0 = arith.constant 0 : i32
    return %arg0, %c0_i32, %arg1 : i32, i32, i32
  }
  func.func @transform_1(%arg0: i32, %arg1: i32) -> (i32, i32) {
    %c0_i32 = arith.constant 0 : i32
    %c0_i32_0 = arith.constant 0 : i32
    %c0_i32_1 = arith.constant 0 : i32
    return %c0_i32, %c0_i32_0 : i32, i32
  }
  func.func @transform_2(%arg0: i32, %arg1: i32) -> (i32, i32) {
    %c0_i32 = arith.constant 0 : i32
    %c0_i32_0 = arith.constant 0 : i32
    %c0_i32_1 = arith.constant 0 : i32
    return %c0_i32, %c0_i32_0 : i32, i32
  }
  func.func @transform_3(%arg0: i32, %arg1: i32) -> (i32, i32, i32) {
    %c0_i32 = arith.constant 0 : i32
    %c0_i32_0 = arith.constant 0 : i32
    return %arg0, %c0_i32, %arg1 : i32, i32, i32
  }
}

module attributes {stable_mosaic.version = 11 : i64} {
  func.func @_conv_bn_stats_kernel(%arg0: i32, %arg1: memref<9x8x8xf32, #tpu.memory_space<vmem>>, %arg2: memref<8x1xf32, #tpu.memory_space<vmem>>, %arg3: memref<1x1x8x384xf32, #tpu.memory_space<vmem>>, %arg4: memref<1x8x256xf32, #tpu.memory_space<vmem>>, %arg5: memref<1x8x2xf32, #tpu.memory_space<vmem>>) attributes {dimension_semantics = [#tpu.dimension_semantics<parallel>], iteration_bounds = array<i64: 2>, scalar_prefetch = 0 : i64, scratch_operands = 0 : i64, tpu.core_type = #tpu.core_type<tc>, window_params = [{pipeline_mode = #tpu.pipeline_mode<synchronous>, transform_indices = @transform_0, window_bounds = array<i64: 9, 8, 8>}, {pipeline_mode = #tpu.pipeline_mode<synchronous>, transform_indices = @transform_1, window_bounds = array<i64: 8, 1>}, {transform_indices = @transform_2, window_bounds = array<i64: 1, 1, 8, 384>}, {transform_indices = @transform_3, window_bounds = array<i64: 1, 8, 256>}, {transform_indices = @transform_4, window_bounds = array<i64: 1, 8, 2>}]} {
    %cst = arith.constant 0.000000e+00 : f32
    %0 = vector.broadcast %cst : f32 to vector<8x256xf32>
    %c0 = arith.constant 0 : index
    %c0_0 = arith.constant 0 : index
    %c0_1 = arith.constant 0 : index
    %c0_2 = arith.constant 0 : index
    %1 = vector.load %arg3[%c0, %c0_0, %c0_1, %c0_2] : memref<1x1x8x384xf32, #tpu.memory_space<vmem>>, vector<1x1x8x384xf32>
    %2 = vector.shape_cast %1 : vector<1x1x8x384xf32> to vector<8x384xf32>
    %3 = vector.extract_strided_slice %2 {offsets = [0, 0], sizes = [8, 256], strides = [1, 1]} : vector<8x384xf32> to vector<8x256xf32>
    %c0_3 = arith.constant 0 : index
    %c0_4 = arith.constant 0 : index
    %c0_5 = arith.constant 0 : index
    %4 = vector.load %arg1[%c0_3, %c0_4, %c0_5] : memref<9x8x8xf32, #tpu.memory_space<vmem>>, vector<1x8x8xf32>
    %5 = vector.shape_cast %4 : vector<1x8x8xf32> to vector<8x8xf32>
    %cst_6 = arith.constant dense<0.000000e+00> : vector<8x256xf32>
    %6 = tpu.matmul %5, %3, %cst_6 {dimension_numbers = #tpu.dot_dimension_numbers<[1], [0], [0], [1], [0, 0, 1, 1], [], []>} : vector<8x8xf32>, vector<8x256xf32>, vector<8x256xf32> -> vector<8x256xf32>
    %7 = arith.addf %0, %6 : vector<8x256xf32>
    %8 = vector.extract_strided_slice %2 {offsets = [0, 16], sizes = [8, 256], strides = [1, 1]} : vector<8x384xf32> to vector<8x256xf32>
    %c1 = arith.constant 1 : index
    %c0_7 = arith.constant 0 : index
    %c0_8 = arith.constant 0 : index
    %9 = vector.load %arg1[%c1, %c0_7, %c0_8] : memref<9x8x8xf32, #tpu.memory_space<vmem>>, vector<1x8x8xf32>
    %10 = vector.shape_cast %9 : vector<1x8x8xf32> to vector<8x8xf32>
    %cst_9 = arith.constant dense<0.000000e+00> : vector<8x256xf32>
    %11 = tpu.matmul %10, %8, %cst_9 {dimension_numbers = #tpu.dot_dimension_numbers<[1], [0], [0], [1], [0, 0, 1, 1], [], []>} : vector<8x8xf32>, vector<8x256xf32>, vector<8x256xf32> -> vector<8x256xf32>
    %12 = arith.addf %7, %11 : vector<8x256xf32>
    %13 = vector.extract_strided_slice %2 {offsets = [0, 32], sizes = [8, 256], strides = [1, 1]} : vector<8x384xf32> to vector<8x256xf32>
    %c2 = arith.constant 2 : index
    %c0_10 = arith.constant 0 : index
    %c0_11 = arith.constant 0 : index
    %14 = vector.load %arg1[%c2, %c0_10, %c0_11] : memref<9x8x8xf32, #tpu.memory_space<vmem>>, vector<1x8x8xf32>
    %15 = vector.shape_cast %14 : vector<1x8x8xf32> to vector<8x8xf32>
    %cst_12 = arith.constant dense<0.000000e+00> : vector<8x256xf32>
    %16 = tpu.matmul %15, %13, %cst_12 {dimension_numbers = #tpu.dot_dimension_numbers<[1], [0], [0], [1], [0, 0, 1, 1], [], []>} : vector<8x8xf32>, vector<8x256xf32>, vector<8x256xf32> -> vector<8x256xf32>
    %17 = arith.addf %12, %16 : vector<8x256xf32>
    %18 = vector.extract_strided_slice %2 {offsets = [0, 48], sizes = [8, 256], strides = [1, 1]} : vector<8x384xf32> to vector<8x256xf32>
    %c3 = arith.constant 3 : index
    %c0_13 = arith.constant 0 : index
    %c0_14 = arith.constant 0 : index
    %19 = vector.load %arg1[%c3, %c0_13, %c0_14] : memref<9x8x8xf32, #tpu.memory_space<vmem>>, vector<1x8x8xf32>
    %20 = vector.shape_cast %19 : vector<1x8x8xf32> to vector<8x8xf32>
    %cst_15 = arith.constant dense<0.000000e+00> : vector<8x256xf32>
    %21 = tpu.matmul %20, %18, %cst_15 {dimension_numbers = #tpu.dot_dimension_numbers<[1], [0], [0], [1], [0, 0, 1, 1], [], []>} : vector<8x8xf32>, vector<8x256xf32>, vector<8x256xf32> -> vector<8x256xf32>
    %22 = arith.addf %17, %21 : vector<8x256xf32>
    %23 = vector.extract_strided_slice %2 {offsets = [0, 64], sizes = [8, 256], strides = [1, 1]} : vector<8x384xf32> to vector<8x256xf32>
    %c4 = arith.constant 4 : index
    %c0_16 = arith.constant 0 : index
    %c0_17 = arith.constant 0 : index
    %24 = vector.load %arg1[%c4, %c0_16, %c0_17] : memref<9x8x8xf32, #tpu.memory_space<vmem>>, vector<1x8x8xf32>
    %25 = vector.shape_cast %24 : vector<1x8x8xf32> to vector<8x8xf32>
    %cst_18 = arith.constant dense<0.000000e+00> : vector<8x256xf32>
    %26 = tpu.matmul %25, %23, %cst_18 {dimension_numbers = #tpu.dot_dimension_numbers<[1], [0], [0], [1], [0, 0, 1, 1], [], []>} : vector<8x8xf32>, vector<8x256xf32>, vector<8x256xf32> -> vector<8x256xf32>
    %27 = arith.addf %22, %26 : vector<8x256xf32>
    %28 = vector.extract_strided_slice %2 {offsets = [0, 80], sizes = [8, 256], strides = [1, 1]} : vector<8x384xf32> to vector<8x256xf32>
    %c5 = arith.constant 5 : index
    %c0_19 = arith.constant 0 : index
    %c0_20 = arith.constant 0 : index
    %29 = vector.load %arg1[%c5, %c0_19, %c0_20] : memref<9x8x8xf32, #tpu.memory_space<vmem>>, vector<1x8x8xf32>
    %30 = vector.shape_cast %29 : vector<1x8x8xf32> to vector<8x8xf32>
    %cst_21 = arith.constant dense<0.000000e+00> : vector<8x256xf32>
    %31 = tpu.matmul %30, %28, %cst_21 {dimension_numbers = #tpu.dot_dimension_numbers<[1], [0], [0], [1], [0, 0, 1, 1], [], []>} : vector<8x8xf32>, vector<8x256xf32>, vector<8x256xf32> -> vector<8x256xf32>
    %32 = arith.addf %27, %31 : vector<8x256xf32>
    %33 = vector.extract_strided_slice %2 {offsets = [0, 96], sizes = [8, 256], strides = [1, 1]} : vector<8x384xf32> to vector<8x256xf32>
    %c6 = arith.constant 6 : index
    %c0_22 = arith.constant 0 : index
    %c0_23 = arith.constant 0 : index
    %34 = vector.load %arg1[%c6, %c0_22, %c0_23] : memref<9x8x8xf32, #tpu.memory_space<vmem>>, vector<1x8x8xf32>
    %35 = vector.shape_cast %34 : vector<1x8x8xf32> to vector<8x8xf32>
    %cst_24 = arith.constant dense<0.000000e+00> : vector<8x256xf32>
    %36 = tpu.matmul %35, %33, %cst_24 {dimension_numbers = #tpu.dot_dimension_numbers<[1], [0], [0], [1], [0, 0, 1, 1], [], []>} : vector<8x8xf32>, vector<8x256xf32>, vector<8x256xf32> -> vector<8x256xf32>
    %37 = arith.addf %32, %36 : vector<8x256xf32>
    %38 = vector.extract_strided_slice %2 {offsets = [0, 112], sizes = [8, 256], strides = [1, 1]} : vector<8x384xf32> to vector<8x256xf32>
    %c7 = arith.constant 7 : index
    %c0_25 = arith.constant 0 : index
    %c0_26 = arith.constant 0 : index
    %39 = vector.load %arg1[%c7, %c0_25, %c0_26] : memref<9x8x8xf32, #tpu.memory_space<vmem>>, vector<1x8x8xf32>
    %40 = vector.shape_cast %39 : vector<1x8x8xf32> to vector<8x8xf32>
    %cst_27 = arith.constant dense<0.000000e+00> : vector<8x256xf32>
    %41 = tpu.matmul %40, %38, %cst_27 {dimension_numbers = #tpu.dot_dimension_numbers<[1], [0], [0], [1], [0, 0, 1, 1], [], []>} : vector<8x8xf32>, vector<8x256xf32>, vector<8x256xf32> -> vector<8x256xf32>
    %42 = arith.addf %37, %41 : vector<8x256xf32>
    %43 = vector.extract_strided_slice %2 {offsets = [0, 128], sizes = [8, 256], strides = [1, 1]} : vector<8x384xf32> to vector<8x256xf32>
    %c8 = arith.constant 8 : index
    %c0_28 = arith.constant 0 : index
    %c0_29 = arith.constant 0 : index
    %44 = vector.load %arg1[%c8, %c0_28, %c0_29] : memref<9x8x8xf32, #tpu.memory_space<vmem>>, vector<1x8x8xf32>
    %45 = vector.shape_cast %44 : vector<1x8x8xf32> to vector<8x8xf32>
    %cst_30 = arith.constant dense<0.000000e+00> : vector<8x256xf32>
    %46 = tpu.matmul %45, %43, %cst_30 {dimension_numbers = #tpu.dot_dimension_numbers<[1], [0], [0], [1], [0, 0, 1, 1], [], []>} : vector<8x8xf32>, vector<8x256xf32>, vector<8x256xf32> -> vector<8x256xf32>
    %47 = arith.addf %42, %46 : vector<8x256xf32>
    %c0_31 = arith.constant 0 : index
    %c0_32 = arith.constant 0 : index
    %48 = vector.load %arg2[%c0_31, %c0_32] : memref<8x1xf32, #tpu.memory_space<vmem>>, vector<8x1xf32>
    %49 = vector.broadcast %48 : vector<8x1xf32> to vector<8x256xf32>
    %50 = arith.addf %47, %49 : vector<8x256xf32>
    %c0_33 = arith.constant 0 : index
    %c0_34 = arith.constant 0 : index
    %c0_35 = arith.constant 0 : index
    %51 = vector.load %arg4[%c0_33, %c0_34, %c0_35] : memref<1x8x256xf32, #tpu.memory_space<vmem>>, vector<1x8x256xf32>
    %52 = vector.shape_cast %51 : vector<1x8x256xf32> to vector<8x256xf32>
    %53 = vector.shape_cast %50 : vector<8x256xf32> to vector<1x8x256xf32>
    tpu.vector_store %arg4[%c0_33, %c0_34, %c0_35], %53 {strides = array<i32>} : memref<1x8x256xf32, #tpu.memory_space<vmem>>, vector<1x8x256xf32>,
    %cst_36 = arith.constant dense<0.000000e+00> : vector<8xf32>
    %54 = vector.multi_reduction <add>, %50, %cst_36 [1] : vector<8x256xf32> to vector<8xf32>
    %55 = vector.shape_cast %54 : vector<8xf32> to vector<8x1xf32>
    %56 = arith.mulf %50, %50 : vector<8x256xf32>
    %cst_37 = arith.constant dense<0.000000e+00> : vector<8xf32>
    %57 = vector.multi_reduction <add>, %56, %cst_37 [1] : vector<8x256xf32> to vector<8xf32>
    %58 = vector.shape_cast %57 : vector<8xf32> to vector<8x1xf32>
    %59 = tpu.concatenate %55, %58 in 1 : vector<8x1xf32>, vector<8x1xf32> -> vector<8x2xf32>
    %c0_38 = arith.constant 0 : index
    %c0_39 = arith.constant 0 : index
    %c0_40 = arith.constant 0 : index
    %60 = vector.load %arg5[%c0_38, %c0_39, %c0_40] : memref<1x8x2xf32, #tpu.memory_space<vmem>>, vector<1x8x2xf32>
    %61 = vector.shape_cast %60 : vector<1x8x2xf32> to vector<8x2xf32>
    %62 = vector.shape_cast %59 : vector<8x2xf32> to vector<1x8x2xf32>
    tpu.vector_store %arg5[%c0_38, %c0_39, %c0_40], %62 {strides = array<i32>} : memref<1x8x2xf32, #tpu.memory_space<vmem>>, vector<1x8x2xf32>,
    return
  }
  func.func @transform_0(%arg0: i32) -> (i32, i32, i32) {
    %c0_i32 = arith.constant 0 : i32
    %c0_i32_0 = arith.constant 0 : i32
    %c0_i32_1 = arith.constant 0 : i32
    %c0_i32_2 = arith.constant 0 : i32
    return %c0_i32, %c0_i32_0, %c0_i32_1 : i32, i32, i32
  }
  func.func @transform_1(%arg0: i32) -> (i32, i32) {
    %c0_i32 = arith.constant 0 : i32
    %c0_i32_0 = arith.constant 0 : i32
    %c0_i32_1 = arith.constant 0 : i32
    return %c0_i32, %c0_i32_0 : i32, i32
  }
  func.func @transform_2(%arg0: i32) -> (i32, i32, i32, i32) {
    %c0_i32 = arith.constant 0 : i32
    %c0_i32_0 = arith.constant 0 : i32
    %c0_i32_1 = arith.constant 0 : i32
    %c0_i32_2 = arith.constant 0 : i32
    return %arg0, %c0_i32, %c0_i32_0, %c0_i32_1 : i32, i32, i32, i32
  }
  func.func @transform_3(%arg0: i32) -> (i32, i32, i32) {
    %c0_i32 = arith.constant 0 : i32
    %c0_i32_0 = arith.constant 0 : i32
    %c0_i32_1 = arith.constant 0 : i32
    return %arg0, %c0_i32, %c0_i32_0 : i32, i32, i32
  }
  func.func @transform_4(%arg0: i32) -> (i32, i32, i32) {
    %c0_i32 = arith.constant 0 : i32
    %c0_i32_0 = arith.constant 0 : i32
    %c0_i32_1 = arith.constant 0 : i32
    return %arg0, %c0_i32, %c0_i32_0 : i32, i32, i32
  }
}

</mosaic_0001>

<llo_original>
// kernel: unit_tcn_forward.3
$region0: #{unit_tcn_forward.3}
  #allocation0 [shape = 'u32[]', space=smem, size = 0x4, offset = 0x4, fixed_abs, tag = 'smem constant byte address 0x4 - core index']
  #allocation1 [shape = 'u32[72,128]{1,0:T(1,128)}', space=vmem, size = 0x9000, scoped, tag = 'internal scratch']
  %s0 = inlined_call_operand.vmem [shape: f32[2,8,256], index: 0, kind: input, shape index: {}]
  %s1 = inlined_call_operand.vmem [shape: f32[8,1], index: 1, kind: input, shape index: {}]
  %s2 = inlined_call_operand.vmem [shape: f32[8,1], index: 2, kind: input, shape index: {}]
  %s3 = inlined_call_operand.vmem [shape: f32[2,8,256], index: 3, kind: output, shape index: {}]
  %s4 = sld [smem:[#allocation0]]
  $region45: #{unit_tcn_forward.3} parent=0
    _
  %s6 = ssub.s32 1, %s4
  %s7 = scalar_select 0, %s6, %s4
  loop: start=0, step=1, limit=4
  $region2: #{unit_tcn_forward.3} parent=0 // loop_pre_header
    _
  $region3: #{unit_tcn_forward.3} parent=0 // loop_header
    %s9 = sphi 0, %s13
    %p10 = scmp.ge.s32.totalorder %s9, 4
    %s16 = sphi 0, %s28
    %s17 = sphi 0, %s24
    %s18 = sphi 0, %s16
    %s19 = sphi 0, %s17
    %s20 = sphi 0, %s18
    %s21 = sphi 0, %s19
    %s33 = sphi 0, %s35
    %s36 = sphi 0, %s33
    %s37 = sphi 0, %s36
    %s53 = sphi 0, %s37
    %s57 = sphi 0, %s57
    %s59 = sphi 0, %s57
    %s60 = sphi 0, %s59
    %s74 = sphi 0, %s60
    %s78 = sphi 0, %s78
    %s80 = sphi 0, %s78
    %s81 = sphi 0, %s80
    %s95 = sphi 0, %s81
    %s103 = sphi 0, %s105
    %s106 = sphi 0, %s103
    %s107 = sphi 0, %s106
    %s123 = sphi 0, %s107
  $region4: #{unit_tcn_forward.3} parent=0 // loop_header_branch
    %12 = sbr.rel (%p10) target = $region8
  $region5: #{unit_tcn_forward.3} parent=0 // loop_body
    %s14 = ssub.s32 %s9, 1
    %s15 = ssub.s32 %s9, 2
    %s22 = sadd.s32 1, %s17
    %p23 = scmp.ge.s32.totalorder %s22, 1
    %s24 = scalar_select %p23, 0, %s22
    %s25 = sadd.s32 1, %s16
    %s26 = scalar_select %p23, %s25, %s16
    %p27 = scmp.ge.s32.totalorder %s26, 2
    %s28 = scalar_select %p27, 0, %s26
    %s29 = ssub.s32 %s16, %s28
    %s30 = ssub.s32 %s17, %s24
    %s31 = sor.u32 %s29, %s30
    %p32 = scmp.eq.s32.totalorder %s31, 0
    %s34 = sadd.s32 %s33, 1
    %s35 = scalar_select %p32, %s33, %s34
    %p38 = pneg %p32
    %p39 = scmp.eq.s32.totalorder %s9, 1
    %p40 = por %p38, %p39
    %p41 = scmp.ne.s32.totalorder %s33, %s36
    %p42 = scmp.eq.s32.totalorder %s9, 0
    %p43 = por %p41, %p42
    %p44 = scmp.ne.s32.totalorder %s33, %s36
    %p45 = scmp.eq.s32.totalorder %s14, 1
    %p46 = por %p44, %p45
    %p47 = scmp.ne.s32.totalorder %s36, %s37
    %p48 = scmp.eq.s32.totalorder %s14, 0
    %p49 = por %p47, %p48
    %p50 = scmp.ne.s32.totalorder %s36, %s37
    %p51 = scmp.eq.s32.totalorder %s15, 1
    %p52 = por %p50, %p51
    %p54 = scmp.ne.s32.totalorder %s37, %s53
    %p55 = scmp.eq.s32.totalorder %s15, 0
    %p56 = por %p54, %p55
    %s58 = sadd.s32 %s57, 1
    %p61 = scmp.eq.s32.totalorder %s9, 1
    %p62 = scmp.ne.s32.totalorder %s57, %s59
    %p63 = scmp.eq.s32.totalorder %s9, 0
    %p64 = por %p62, %p63
    %p65 = scmp.ne.s32.totalorder %s57, %s59
    %p66 = scmp.eq.s32.totalorder %s14, 1
    %p67 = por %p65, %p66
    %p68 = scmp.ne.s32.totalorder %s59, %s60
    %p69 = scmp.eq.s32.totalorder %s14, 0
    %p70 = por %p68, %p69
    %p71 = scmp.ne.s32.totalorder %s59, %s60
    %p72 = scmp.eq.s32.totalorder %s15, 1
    %p73 = por %p71, %p72
    %p75 = scmp.ne.s32.totalorder %s60, %s74
    %p76 = scmp.eq.s32.totalorder %s15, 0
    %p77 = por %p75, %p76
    %s79 = sadd.s32 %s78, 1
    %p82 = scmp.eq.s32.totalorder %s9, 1
    %p83 = scmp.ne.s32.totalorder %s78, %s80
    %p84 = scmp.eq.s32.totalorder %s9, 0
    %p85 = por %p83, %p84
    %p86 = scmp.ne.s32.totalorder %s78, %s80
    %p87 = scmp.eq.s32.totalorder %s14, 1
    %p88 = por %p86, %p87
    %p89 = scmp.ne.s32.totalorder %s80, %s81
    %p90 = scmp.eq.s32.totalorder %s14, 0
    %p91 = por %p89, %p90
    %p92 = scmp.ne.s32.totalorder %s80, %s81
    %p93 = scmp.eq.s32.totalorder %s15, 1
    %p94 = por %p92, %p93
    %p96 = scmp.ne.s32.totalorder %s81, %s95
    %p97 = scmp.eq.s32.totalorder %s15, 0
    %p98 = por %p96, %p97
    %s99 = ssub.s32 %s16, %s28
    %s100 = ssub.s32 %s17, %s24
    %s101 = sor.u32 %s99, %s100
    %p102 = scmp.eq.s32.totalorder %s101, 0
    %s104 = sadd.s32 %s103, 1
    %s105 = scalar_select %p102, %s103, %s104
    %p108 = pneg %p102
    %p109 = scmp.eq.s32.totalorder %s9, 1
    %p110 = por %p108, %p109
    %p111 = scmp.ne.s32.totalorder %s103, %s106
    %p112 = scmp.eq.s32.totalorder %s9, 0
    %p113 = por %p111, %p112
    %p114 = scmp.ne.s32.totalorder %s103, %s106
    %p115 = scmp.eq.s32.totalorder %s14, 1
    %p116 = por %p114, %p115
    %p117 = scmp.ne.s32.totalorder %s106, %s107
    %p118 = scmp.eq.s32.totalorder %s14, 0
    %p119 = por %p117, %p118
    %p120 = scmp.ne.s32.totalorder %s106, %s107
    %p121 = scmp.eq.s32.totalorder %s15, 1
    %p122 = por %p120, %p121
    %p124 = scmp.ne.s32.totalorder %s107, %s123
    %p125 = scmp.eq.s32.totalorder %s15, 0
    %p126 = por %p124, %p125
    %p127 = scmp.le.s32.totalorder 1, %s9
    %p128 = scmp.lt.s32.totalorder %s9, 3
    %p129 = pnand %p127, %p128
    %p130 = pneg %p129
    // Predicated region
    $region9: #{unit_tcn_forward.3} parent=5 // pred_check
      _
    $region10: #{unit_tcn_forward.3} parent=5 // pred_check_branch
      %132 = sbr.rel (%p129) target = $region12
    $region11: #{unit_tcn_forward.3} parent=5 // pred_region
      %s133 = ssub.s32 %s9, 1
      // Predicated region
      $region13: #{unit_tcn_forward.3} parent=11 // pred_check
        %p134 = pneg %p70
      $region14: #{unit_tcn_forward.3} parent=11 // pred_check_branch
        %136 = sbr.rel (%p134) target = $region16
      $region15: #{unit_tcn_forward.3} parent=11 // pred_region
        _
      $region16: #{unit_tcn_forward.3} parent=11 // pred_fallthru
        _
      // Predicated region
      $region17: #{unit_tcn_forward.3} parent=11 // pred_check
        %p137 = pneg %p91
      $region18: #{unit_tcn_forward.3} parent=11 // pred_check_branch
        %139 = sbr.rel (%p137) target = $region20
      $region19: #{unit_tcn_forward.3} parent=11 // pred_region
        _
      $region20: #{unit_tcn_forward.3} parent=11 // pred_fallthru
        _
    $region12: #{unit_tcn_forward.3} parent=5 // pred_fallthru
      _
    %p140 = scmp.lt.s32.totalorder %s9, 2
    // Predicated region
    $region21: #{unit_tcn_forward.3} parent=5 // pred_check
      %p141 = pneg %p140
    $region22: #{unit_tcn_forward.3} parent=5 // pred_check_branch
      %143 = sbr.rel (%p141) target = $region24
    $region23: #{unit_tcn_forward.3} parent=5 // pred_region
      // Predicated region
      $region25: #{unit_tcn_forward.3} parent=23 // pred_check
        %p144 = pneg %p43
      $region26: #{unit_tcn_forward.3} parent=23 // pred_check_branch
        %146 = sbr.rel (%p144) target = $region28
      $region27: #{unit_tcn_forward.3} parent=23 // pred_region
        %s147 = smul.u32 2, %s17
        %p148 = scmp.lt.s32.totalorder %s16, 1
        %s149 = scalar_select %p148, %s16, 1
        %p150 = scmp.lt.s32.totalorder %s147, 1
        %s151 = scalar_select %p150, %s147, 1
        %s152 = smul.addr %s149, 2
        %s153 = sadd.s32 %s151, %s152
        %s154 = smul.addr %s153, 8
        %s155 = scalar_lea.vmem %s0, %s154
        %s156 = smul.u32 2, %s17
      $region28: #{unit_tcn_forward.3} parent=23 // pred_fallthru
        _
    $region24: #{unit_tcn_forward.3} parent=5 // pred_fallthru
      _
    %p157 = scmp.le.s32.totalorder 1, %s9
    %p158 = scmp.lt.s32.totalorder %s9, 3
    %p159 = pnand %p157, %p158
    %p160 = pneg %p159
    // Predicated region
    $region29: #{unit_tcn_forward.3} parent=5 // pred_check
      _
    $region30: #{unit_tcn_forward.3} parent=5 // pred_check_branch
      %162 = sbr.rel (%p159) target = $region32
    $region31: #{unit_tcn_forward.3} parent=5 // pred_region
      %s163 = ssub.s32 %s9, 1
      %s164 = smul.u32 2, %s19
      %p165 = scmp.lt.s32.totalorder %s18, 1
      %s166 = scalar_select %p165, %s18, 1
      %p167 = scmp.lt.s32.totalorder %s164, 1
      %s168 = scalar_select %p167, %s164, 1
      %s169 = smul.addr %s166, 2
      %s170 = sadd.s32 %s168, %s169
      %s171 = smul.addr %s170, 8
      %s172 = scalar_lea.vmem %s0, %s171
      %p173 = pneg %p49
      %p174 = pneg %p46
      %p175 = pneg %p70
      %p176 = pneg %p67
      %p177 = pneg %p91
      %p178 = pneg %p88
      %p179 = pneg %p119
      %p180 = pneg %p116
      %s181 = smul.u32 2, %s19
      %p182 = scmp.lt.s32.totalorder %s18, 1
      %s183 = scalar_select %p182, %s18, 1
      %p184 = scmp.lt.s32.totalorder %s181, 1
      %s185 = scalar_select %p184, %s181, 1
      %s186 = smul.addr %s183, 2
      %s187 = sadd.s32 %s185, %s186
      %s188 = smul.addr %s187, 8
      %s189 = scalar_lea.vmem %s3, %s188
      %s190 = smul.u32 2, %s19
      %p191 = scmp.lt.s32.totalorder %s18, 1
      %s192 = scalar_select %p191, %s18, 1
      %p193 = scmp.lt.s32.totalorder %s190, 1
      %s194 = scalar_select %p193, %s190, 1
      %s195 = smul.addr %s192, 2
      %s196 = sadd.s32 %s194, %s195
      %s197 = smul.addr %s196, 8
      %s198 = scalar_lea.vmem %s0, %s197
      %s199 = smul.u32 2, %s19
      %s200 = smul.u32 2, %s19
      %p201 = scmp.lt.s32.totalorder %s18, 1
      %s202 = scalar_select %p201, %s18, 1
      %p203 = scmp.lt.s32.totalorder %s200, 1
      %s204 = scalar_select %p203, %s200, 1
      %s205 = smul.addr %s202, 2
      %s206 = sadd.s32 %s204, %s205
      %s207 = smul.addr %s206, 8
      %s208 = scalar_lea.vmem %s3, %s207
      %s209 = smul.u32 2, %s19
      %v210 = vld [vmem:[%s198] sm:$0xff]
      %v211 = vld [vmem:[%s198 + $0x8] sm:$0xff]
      %v212 = vld [vmem:[%s1] sm:$0xff]
      %214 = vset.pattern.permute.xlu0 0
      %215 = vperm.xlu0 %214, %v212
      %v216 = vpop.permute.xlu0 %215
      %v218 = vmul.f32 %v210, %v216
      %v219 = vmul.f32 %v211, %v216
      %v220 = vld [vmem:[%s2] sm:$0xff]
      %222 = vset.pattern.permute.xlu0 0
      %223 = vperm.xlu0 %222, %v220
      %v224 = vpop.permute.xlu0 %223
      %v226 = vadd.f32 %v218, %v224
      %v227 = vadd.f32 %v219, %v224
      %228 = vst [vmem:[%s208] sm:$0xff] %v226
      %229 = vst [vmem:[%s208 + $0x8] sm:$0xff] %v227
      %s230 = smul.u32 2, %s19
      %p231 = scmp.lt.s32.totalorder %s18, 1
      %s232 = scalar_select %p231, %s18, 1
      %p233 = scmp.lt.s32.totalorder %s230, 1
      %s234 = scalar_select %p233, %s230, 1
      %s235 = smul.addr %s232, 2
      %s236 = sadd.s32 %s234, %s235
      %s237 = smul.addr %s236, 8
      %s238 = scalar_lea.vmem %s3, %s237
      // Predicated region
      $region33: #{unit_tcn_forward.3} parent=31 // pred_check
        %p239 = pneg %p116
      $region34: #{unit_tcn_forward.3} parent=31 // pred_check_branch
        %241 = sbr.rel (%p239) target = $region36
      $region35: #{unit_tcn_forward.3} parent=31 // pred_region
        %s242 = smul.u32 2, %s19
      $region36: #{unit_tcn_forward.3} parent=31 // pred_fallthru
        _
    $region32: #{unit_tcn_forward.3} parent=5 // pred_fallthru
      _
    %p243 = scmp.le.s32.totalorder 2, %s9
    // Predicated region
    $region37: #{unit_tcn_forward.3} parent=5 // pred_check
      %p244 = pneg %p243
    $region38: #{unit_tcn_forward.3} parent=5 // pred_check_branch
      %246 = sbr.rel (%p244) target = $region40
    $region39: #{unit_tcn_forward.3} parent=5 // pred_region
      %s247 = ssub.s32 %s9, 2
      // Predicated region
      $region41: #{unit_tcn_forward.3} parent=39 // pred_check
        %p248 = pneg %p122
      $region42: #{unit_tcn_forward.3} parent=39 // pred_check_branch
        %250 = sbr.rel (%p248) target = $region44
      $region43: #{unit_tcn_forward.3} parent=39 // pred_region
        %s251 = smul.u32 2, %s21
        %p252 = scmp.lt.s32.totalorder %s20, 1
        %s253 = scalar_select %p252, %s20, 1
        %p254 = scmp.lt.s32.totalorder %s251, 1
        %s255 = scalar_select %p254, %s251, 1
        %s256 = smul.addr %s253, 2
        %s257 = sadd.s32 %s255, %s256
        %s258 = smul.addr %s257, 8
        %s259 = scalar_lea.vmem %s3, %s258
      $region44: #{unit_tcn_forward.3} parent=39 // pred_fallthru
        _
    $region40: #{unit_tcn_forward.3} parent=5 // pred_fallthru
      _
  $region6: #{unit_tcn_forward.3} parent=0 // loop_footer
    %s13 = sadd.s32 1, %s9
  $region7: #{unit_tcn_forward.3} parent=0 // loop_footer_branch
    %8 = sbr.rel target = $region3
  $region8: #{unit_tcn_forward.3} parent=0 // loop_exit
    _

// kernel: unit_tcn_forward.2
$region0: #{unit_tcn_forward.2}
  #allocation0 [shape = 'u32[]', space=smem, size = 0x4, offset = 0x4, fixed_abs, tag = 'smem constant byte address 0x4 - core index']
  #allocation1 [shape = 'u32[72,128]{1,0:T(1,128)}', space=vmem, size = 0x9000, scoped, tag = 'internal scratch']
  %s0 = inlined_call_operand.vmem [shape: f32[9,8,8], index: 0, kind: input, shape index: {}]
  %s1 = inlined_call_operand.vmem [shape: f32[8,1], index: 1, kind: input, shape index: {}]
  %s2 = inlined_call_operand.vmem [shape: f32[2,1,8,384], index: 2, kind: input, shape index: {}]
  %s3 = inlined_call_operand.vmem [shape: f32[2,8,256], index: 3, kind: output, shape index: {0}]
  %s4 = inlined_call_operand.vmem [shape: f32[2,8,2], index: 4, kind: output, shape index: {1}]
  %5 = xla_tuple %s3, %s4
  %s6 = sld [smem:[#allocation0]]
  $region53: #{unit_tcn_forward.2} parent=0
    _
  %s8 = ssub.s32 1, %s6
  %s9 = scalar_select 0, %s8, %s6
  loop: start=0, step=1, limit=4
  $region2: #{unit_tcn_forward.2} parent=0 // loop_pre_header
    _
  $region3: #{unit_tcn_forward.2} parent=0 // loop_header
    %s11 = sphi 0, %s15
    %p12 = scmp.ge.s32.totalorder %s11, 4
    %s19 = sphi 0, %s19
    %s21 = sphi 0, %s19
    %s22 = sphi 0, %s21
    %s36 = sphi 0, %s22
    %s40 = sphi 0, %s40
    %s42 = sphi 0, %s40
    %s43 = sphi 0, %s42
    %s57 = sphi 0, %s43
    %s63 = sphi 0, %s65
    %s66 = sphi 0, %s63
    %s67 = sphi 0, %s66
    %s83 = sphi 0, %s67
    %s89 = sphi 0, %s91
    %s92 = sphi 0, %s89
    %s93 = sphi 0, %s92
    %s109 = sphi 0, %s93
    %s115 = sphi 0, %s117
    %s118 = sphi 0, %s115
    %s119 = sphi 0, %s118
    %s135 = sphi 0, %s119
  $region4: #{unit_tcn_forward.2} parent=0 // loop_header_branch
    %14 = sbr.rel (%p12) target = $region8
  $region5: #{unit_tcn_forward.2} parent=0 // loop_body
    %s16 = ssub.s32 %s11, 1
    %s17 = ssub.s32 %s11, 2
    %s18 = sadd.s32 %s11, 1
    %s20 = sadd.s32 %s19, 1
    %p23 = scmp.eq.s32.totalorder %s11, 1
    %p24 = scmp.ne.s32.totalorder %s19, %s21
    %p25 = scmp.eq.s32.totalorder %s11, 0
    %p26 = por %p24, %p25
    %p27 = scmp.ne.s32.totalorder %s19, %s21
    %p28 = scmp.eq.s32.totalorder %s16, 1
    %p29 = por %p27, %p28
    %p30 = scmp.ne.s32.totalorder %s21, %s22
    %p31 = scmp.eq.s32.totalorder %s16, 0
    %p32 = por %p30, %p31
    %p33 = scmp.ne.s32.totalorder %s21, %s22
    %p34 = scmp.eq.s32.totalorder %s17, 1
    %p35 = por %p33, %p34
    %p37 = scmp.ne.s32.totalorder %s22, %s36
    %p38 = scmp.eq.s32.totalorder %s17, 0
    %p39 = por %p37, %p38
    %s41 = sadd.s32 %s40, 1
    %p44 = scmp.eq.s32.totalorder %s11, 1
    %p45 = scmp.ne.s32.totalorder %s40, %s42
    %p46 = scmp.eq.s32.totalorder %s11, 0
    %p47 = por %p45, %p46
    %p48 = scmp.ne.s32.totalorder %s40, %s42
    %p49 = scmp.eq.s32.totalorder %s16, 1
    %p50 = por %p48, %p49
    %p51 = scmp.ne.s32.totalorder %s42, %s43
    %p52 = scmp.eq.s32.totalorder %s16, 0
    %p53 = por %p51, %p52
    %p54 = scmp.ne.s32.totalorder %s42, %s43
    %p55 = scmp.eq.s32.totalorder %s17, 1
    %p56 = por %p54, %p55
    %p58 = scmp.ne.s32.totalorder %s43, %s57
    %p59 = scmp.eq.s32.totalorder %s17, 0
    %p60 = por %p58, %p59
    %s61 = ssub.s32 %s11, %s18
    %p62 = scmp.eq.s32.totalorder %s61, 0
    %s64 = sadd.s32 %s63, 1
    %s65 = scalar_select %p62, %s63, %s64
    %p68 = pneg %p62
    %p69 = scmp.eq.s32.totalorder %s11, 1
    %p70 = por %p68, %p69
    %p71 = scmp.ne.s32.totalorder %s63, %s66
    %p72 = scmp.eq.s32.totalorder %s11, 0
    %p73 = por %p71, %p72
    %p74 = scmp.ne.s32.totalorder %s63, %s66
    %p75 = scmp.eq.s32.totalorder %s16, 1
    %p76 = por %p74, %p75
    %p77 = scmp.ne.s32.totalorder %s66, %s67
    %p78 = scmp.eq.s32.totalorder %s16, 0
    %p79 = por %p77, %p78
    %p80 = scmp.ne.s32.totalorder %s66, %s67
    %p81 = scmp.eq.s32.totalorder %s17, 1
    %p82 = por %p80, %p81
    %p84 = scmp.ne.s32.totalorder %s67, %s83
    %p85 = scmp.eq.s32.totalorder %s17, 0
    %p86 = por %p84, %p85
    %s87 = ssub.s32 %s11, %s18
    %p88 = scmp.eq.s32.totalorder %s87, 0
    %s90 = sadd.s32 %s89, 1
    %s91 = scalar_select %p88, %s89, %s90
    %p94 = pneg %p88
    %p95 = scmp.eq.s32.totalorder %s11, 1
    %p96 = por %p94, %p95
    %p97 = scmp.ne.s32.totalorder %s89, %s92
    %p98 = scmp.eq.s32.totalorder %s11, 0
    %p99 = por %p97, %p98
    %p100 = scmp.ne.s32.totalorder %s89, %s92
    %p101 = scmp.eq.s32.totalorder %s16, 1
    %p102 = por %p100, %p101
    %p103 = scmp.ne.s32.totalorder %s92, %s93
    %p104 = scmp.eq.s32.totalorder %s16, 0
    %p105 = por %p103, %p104
    %p106 = scmp.ne.s32.totalorder %s92, %s93
    %p107 = scmp.eq.s32.totalorder %s17, 1
    %p108 = por %p106, %p107
    %p110 = scmp.ne.s32.totalorder %s93, %s109
    %p111 = scmp.eq.s32.totalorder %s17, 0
    %p112 = por %p110, %p111
    %s113 = ssub.s32 %s11, %s18
    %p114 = scmp.eq.s32.totalorder %s113, 0
    %s116 = sadd.s32 %s115, 1
    %s117 = scalar_select %p114, %s115, %s116
    %p120 = pneg %p114
    %p121 = scmp.eq.s32.totalorder %s11, 1
    %p122 = por %p120, %p121
    %p123 = scmp.ne.s32.totalorder %s115, %s118
    %p124 = scmp.eq.s32.totalorder %s11, 0
    %p125 = por %p123, %p124
    %p126 = scmp.ne.s32.totalorder %s115, %s118
    %p127 = scmp.eq.s32.totalorder %s16, 1
    %p128 = por %p126, %p127
    %p129 = scmp.ne.s32.totalorder %s118, %s119
    %p130 = scmp.eq.s32.totalorder %s16, 0
    %p131 = por %p129, %p130
    %p132 = scmp.ne.s32.totalorder %s118, %s119
    %p133 = scmp.eq.s32.totalorder %s17, 1
    %p134 = por %p132, %p133
    %p136 = scmp.ne.s32.totalorder %s119, %s135
    %p137 = scmp.eq.s32.totalorder %s17, 0
    %p138 = por %p136, %p137
    %p139 = scmp.le.s32.totalorder 1, %s11
    %p140 = scmp.lt.s32.totalorder %s11, 3
    %p141 = pnand %p139, %p140
    %p142 = pneg %p141
    // Predicated region
    $region9: #{unit_tcn_forward.2} parent=5 // pred_check
      _
    $region10: #{unit_tcn_forward.2} parent=5 // pred_check_branch
      %144 = sbr.rel (%p141) target = $region12
    $region11: #{unit_tcn_forward.2} parent=5 // pred_region
      %s145 = ssub.s32 %s11, 1
      // Predicated region
      $region13: #{unit_tcn_forward.2} parent=11 // pred_check
        %p146 = pneg %p32
      $region14: #{unit_tcn_forward.2} parent=11 // pred_check_branch
        %148 = sbr.rel (%p146) target = $region16
      $region15: #{unit_tcn_forward.2} parent=11 // pred_region
        _
      $region16: #{unit_tcn_forward.2} parent=11 // pred_fallthru
        _
      // Predicated region
      $region17: #{unit_tcn_forward.2} parent=11 // pred_check
        %p149 = pneg %p53
      $region18: #{unit_tcn_forward.2} parent=11 // pred_check_branch
        %151 = sbr.rel (%p149) target = $region20
      $region19: #{unit_tcn_forward.2} parent=11 // pred_region
        _
      $region20: #{unit_tcn_forward.2} parent=11 // pred_fallthru
        _
    $region12: #{unit_tcn_forward.2} parent=5 // pred_fallthru
      _
    %p152 = scmp.lt.s32.totalorder %s11, 2
    // Predicated region
    $region21: #{unit_tcn_forward.2} parent=5 // pred_check
      %p153 = pneg %p152
    $region22: #{unit_tcn_forward.2} parent=5 // pred_check_branch
      %155 = sbr.rel (%p153) target = $region24
    $region23: #{unit_tcn_forward.2} parent=5 // pred_region
      // Predicated region
      $region25: #{unit_tcn_forward.2} parent=23 // pred_check
        %p156 = pneg %p73
      $region26: #{unit_tcn_forward.2} parent=23 // pred_check_branch
        %158 = sbr.rel (%p156) target = $region28
      $region27: #{unit_tcn_forward.2} parent=23 // pred_region
        %p159 = scmp.lt.s32.totalorder %s11, 1
        %s160 = scalar_select %p159, %s11, 1
        %s161 = smul.addr %s160, 3
        %s162 = smul.addr %s161, 8
        %s163 = scalar_lea.vmem %s2, %s162
      $region28: #{unit_tcn_forward.2} parent=23 // pred_fallthru
        _
    $region24: #{unit_tcn_forward.2} parent=5 // pred_fallthru
      _
    %p164 = scmp.le.s32.totalorder 1, %s11
    %p165 = scmp.lt.s32.totalorder %s11, 3
    %p166 = pnand %p164, %p165
    %p167 = pneg %p166
    // Predicated region
    $region29: #{unit_tcn_forward.2} parent=5 // pred_check
      _
    $region30: #{unit_tcn_forward.2} parent=5 // pred_check_branch
      %169 = sbr.rel (%p166) target = $region32
    $region31: #{unit_tcn_forward.2} parent=5 // pred_region
      %s170 = ssub.s32 %s11, 1
      %p171 = pneg %p32
      %p172 = pneg %p29
      %p173 = pneg %p53
      %p174 = pneg %p50
      %p175 = scmp.lt.s32.totalorder %s16, 1
      %s176 = scalar_select %p175, %s16, 1
      %s177 = smul.addr %s176, 3
      %s178 = smul.addr %s177, 8
      %s179 = scalar_lea.vmem %s2, %s178
      %p180 = pneg %p79
      %p181 = pneg %p76
      %p182 = pneg %p105
      %p183 = pneg %p102
      %p184 = scmp.lt.s32.totalorder %s16, 1
      %s185 = scalar_select %p184, %s16, 1
      %s186 = smul.addr %s185, 2
      %s187 = smul.addr %s186, 8
      %s188 = scalar_lea.vmem %s3, %s187
      %p189 = pneg %p131
      %p190 = pneg %p128
      %p191 = scmp.lt.s32.totalorder %s16, 1
      %s192 = scalar_select %p191, %s16, 1
      %s193 = smul.addr %s192, 8
      %s194 = scalar_lea.vmem %s4, %s193
      %p195 = scmp.lt.s32.totalorder %s16, 1
      %s196 = scalar_select %p195, %s16, 1
      %s197 = smul.addr %s196, 3
      %s198 = smul.addr %s197, 8
      %s199 = scalar_lea.vmem %s2, %s198
      %p200 = scmp.lt.s32.totalorder %s16, 1
      %s201 = scalar_select %p200, %s16, 1
      %s202 = smul.addr %s201, 2
      %s203 = smul.addr %s202, 8
      %s204 = scalar_lea.vmem %s3, %s203
      %p205 = scmp.lt.s32.totalorder %s16, 1
      %s206 = scalar_select %p205, %s16, 1
      %s207 = smul.addr %s206, 8
      %s208 = scalar_lea.vmem %s4, %s207
      %v209 = vld [vmem:[%s199] sm:$0xff]
      %v210 = vld [vmem:[%s199 + $0x8] sm:$0xff]
      %v211 = vld [vmem:[%s199 + $0x10] sm:$0xff]
      %v212 = vld [vmem:[%s0] sm:$0xff]
      %s213 = scalar_lea.vmem %s0, 8
      %v214 = vld [vmem:[%s213] sm:$0xff]
      %218 = vrot.lane.b32.xlu0 %v209, 112
      %v219 = vpop.permute.xlu0 %218
      %220 = vrot.lane.b32.xlu0 %v210, 112
      %v221 = vpop.permute.xlu0 %220
      %222 = vrot.lane.b32.xlu0 %v211, 112
      %v223 = vpop.permute.xlu0 %222
      %vm224 = vcmask 916480
      %v225 = vsel %vm224, %v219, %v221
      %v226 = vsel %vm224, %v221, %v223
      %vm229 = vcmask 64512
      %v231 = vsel %vm229, %v214, 0
      %233 = vmatpush.msra.mxu0 0.0
      %234 = vmatpush.msra.mxu0 0.0
      %235 = vmatpush.msra.mxu0 0.0
      %236 = vmatpush.msra.mxu0 0.0
      %237 = vmatpush.msra.mxu0 0.0
      %238 = vmatpush.msra.mxu0 0.0
      %239 = vmatpush.msra.mxu0 0.0
      %240 = vmatpush.msra.mxu0 0.0
      %241 = vmatpush.msra.mxu0 0.0
      %242 = vmatpush.msra.mxu0 0.0
      %243 = vmatpush.msra.mxu0 0.0
      %244 = vmatpush.msra.mxu0 0.0
      %245 = vmatpush.msra.mxu0 0.0
      %246 = vmatpush.msra.mxu0 0.0
      %247 = vmatpush.msra.mxu0 0.0
      %248 = vmatpush.msra.mxu0 %v225
      %249 = vmatmul.f32.gmra.mxu0 %v231
      %v250 = vpop.f32.mrf.mxu0
      %v251 = vadd.f32 0.0, %v250
      %252 = vdwg.mxu0
      %253 = vmatpush.msra.mxu0 0.0
      %254 = vmatpush.msra.mxu0 0.0
      %255 = vmatpush.msra.mxu0 0.0
      %256 = vmatpush.msra.mxu0 0.0
      %257 = vmatpush.msra.mxu0 0.0
      %258 = vmatpush.msra.mxu0 0.0
      %259 = vmatpush.msra.mxu0 0.0
      %260 = vmatpush.msra.mxu0 0.0
      %261 = vmatpush.msra.mxu0 0.0
      %262 = vmatpush.msra.mxu0 0.0
      %263 = vmatpush.msra.mxu0 0.0
      %264 = vmatpush.msra.mxu0 0.0
      %265 = vmatpush.msra.mxu0 0.0
      %266 = vmatpush.msra.mxu0 0.0
      %267 = vmatpush.msra.mxu0 0.0
      %268 = vmatpush.msra.mxu0 %v226
      %269 = vmatmul.f32.gmra.mxu0 %v231
      %v270 = vpop.f32.mrf.mxu0
      %v271 = vadd.f32 0.0, %v270
      %272 = vdwg.mxu0
      %v274 = vsel %vm229, %v212, 0
      %276 = vmatpush.msra.mxu0 0.0
      %277 = vmatpush.msra.mxu0 0.0
      %278 = vmatpush.msra.mxu0 0.0
      %279 = vmatpush.msra.mxu0 0.0
      %280 = vmatpush.msra.mxu0 0.0
      %281 = vmatpush.msra.mxu0 0.0
      %282 = vmatpush.msra.mxu0 0.0
      %283 = vmatpush.msra.mxu0 0.0
      %284 = vmatpush.msra.mxu0 0.0
      %285 = vmatpush.msra.mxu0 0.0
      %286 = vmatpush.msra.mxu0 0.0
      %287 = vmatpush.msra.mxu0 0.0
      %288 = vmatpush.msra.mxu0 0.0
      %289 = vmatpush.msra.mxu0 0.0
      %290 = vmatpush.msra.mxu0 0.0
      %291 = vmatpush.msra.mxu0 %v209
      %292 = vmatmul.f32.gmra.mxu0 %v274
      %v293 = vpop.f32.mrf.mxu0
      %v294 = vadd.f32 %v251, %v293
      %295 = vdwg.mxu0
      %296 = vmatpush.msra.mxu0 0.0
      %297 = vmatpush.msra.mxu0 0.0
      %298 = vmatpush.msra.mxu0 0.0
      %299 = vmatpush.msra.mxu0 0.0
      %300 = vmatpush.msra.mxu0 0.0
      %301 = vmatpush.msra.mxu0 0.0
      %302 = vmatpush.msra.mxu0 0.0
      %303 = vmatpush.msra.mxu0 0.0
      %304 = vmatpush.msra.mxu0 0.0
      %305 = vmatpush.msra.mxu0 0.0
      %306 = vmatpush.msra.mxu0 0.0
      %307 = vmatpush.msra.mxu0 0.0
      %308 = vmatpush.msra.mxu0 0.0
      %309 = vmatpush.msra.mxu0 0.0
      %310 = vmatpush.msra.mxu0 0.0
      %311 = vmatpush.msra.mxu0 %v210
      %312 = vmatmul.f32.gmra.mxu0 %v274
      %v313 = vpop.f32.mrf.mxu0
      %v314 = vadd.f32 %v271, %v313
      %315 = vdwg.mxu0
      %s316 = scalar_lea.vmem %s0, 16
      %v317 = vld [vmem:[%s316] sm:$0xff]
      %318 = vrot.lane.b32.xlu0 %v209, 96
      %v319 = vpop.permute.xlu0 %318
      %320 = vrot.lane.b32.xlu0 %v210, 96
      %v321 = vpop.permute.xlu0 %320
      %322 = vrot.lane.b32.xlu0 %v211, 96
      %v323 = vpop.permute.xlu0 %322
      %vm324 = vcmask 785408
      %v325 = vsel %vm324, %v319, %v321
      %v326 = vsel %vm324, %v321, %v323
      %v330 = vsel %vm229, %v317, 0
      %332 = vmatpush.msra.mxu0 0.0
      %333 = vmatpush.msra.mxu0 0.0
      %334 = vmatpush.msra.mxu0 0.0
      %335 = vmatpush.msra.mxu0 0.0
      %336 = vmatpush.msra.mxu0 0.0
      %337 = vmatpush.msra.mxu0 0.0
      %338 = vmatpush.msra.mxu0 0.0
      %339 = vmatpush.msra.mxu0 0.0
      %340 = vmatpush.msra.mxu0 0.0
      %341 = vmatpush.msra.mxu0 0.0
      %342 = vmatpush.msra.mxu0 0.0
      %343 = vmatpush.msra.mxu0 0.0
      %344 = vmatpush.msra.mxu0 0.0
      %345 = vmatpush.msra.mxu0 0.0
      %346 = vmatpush.msra.mxu0 0.0
      %347 = vmatpush.msra.mxu0 %v325
      %348 = vmatmul.f32.gmra.mxu0 %v330
      %v349 = vpop.f32.mrf.mxu0
      %v350 = vadd.f32 0.0, %v349
      %351 = vdwg.mxu0
      %352 = vmatpush.msra.mxu0 0.0
      %353 = vmatpush.msra.mxu0 0.0
      %354 = vmatpush.msra.mxu0 0.0
      %355 = vmatpush.msra.mxu0 0.0
      %356 = vmatpush.msra.mxu0 0.0
      %357 = vmatpush.msra.mxu0 0.0
      %358 = vmatpush.msra.mxu0 0.0
      %359 = vmatpush.msra.mxu0 0.0
      %360 = vmatpush.msra.mxu0 0.0
      %361 = vmatpush.msra.mxu0 0.0
      %362 = vmatpush.msra.mxu0 0.0
      %363 = vmatpush.msra.mxu0 0.0
      %364 = vmatpush.msra.mxu0 0.0
      %365 = vmatpush.msra.mxu0 0.0
      %366 = vmatpush.msra.mxu0 0.0
      %367 = vmatpush.msra.mxu0 %v326
      %368 = vmatmul.f32.gmra.mxu0 %v330
      %v369 = vpop.f32.mrf.mxu0
      %v370 = vadd.f32 0.0, %v369
      %371 = vdwg.mxu0
      %v372 = vadd.f32 %v294, %v350
      %v373 = vadd.f32 %v314, %v370
      %s374 = scalar_lea.vmem %s0, 24
      %v375 = vld [vmem:[%s374] sm:$0xff]
      %376 = vrot.lane.b32.xlu0 %v209, 80
      %v377 = vpop.permute.xlu0 %376
      %378 = vrot.lane.b32.xlu0 %v210, 80
      %v379 = vpop.permute.xlu0 %378
      %380 = vrot.lane.b32.xlu0 %v211, 80
      %v381 = vpop.permute.xlu0 %380
      %vm382 = vcmask 654336
      %v383 = vsel %vm382, %v377, %v379
      %v384 = vsel %vm382, %v379, %v381
      %v388 = vsel %vm229, %v375, 0
      %390 = vmatpush.msra.mxu0 0.0
      %391 = vmatpush.msra.mxu0 0.0
      %392 = vmatpush.msra.mxu0 0.0
      %393 = vmatpush.msra.mxu0 0.0
      %394 = vmatpush.msra.mxu0 0.0
      %395 = vmatpush.msra.mxu0 0.0
      %396 = vmatpush.msra.mxu0 0.0
      %397 = vmatpush.msra.mxu0 0.0
      %398 = vmatpush.msra.mxu0 0.0
      %399 = vmatpush.msra.mxu0 0.0
      %400 = vmatpush.msra.mxu0 0.0
      %401 = vmatpush.msra.mxu0 0.0
      %402 = vmatpush.msra.mxu0 0.0
      %403 = vmatpush.msra.mxu0 0.0
      %404 = vmatpush.msra.mxu0 0.0
      %405 = vmatpush.msra.mxu0 %v383
      %406 = vmatmul.f32.gmra.mxu0 %v388
      %v407 = vpop.f32.mrf.mxu0
      %v408 = vadd.f32 0.0, %v407
      %409 = vdwg.mxu0
      %410 = vmatpush.msra.mxu0 0.0
      %411 = vmatpush.msra.mxu0 0.0
      %412 = vmatpush.msra.mxu0 0.0
      %413 = vmatpush.msra.mxu0 0.0
      %414 = vmatpush.msra.mxu0 0.0
      %415 = vmatpush.msra.mxu0 0.0
      %416 = vmatpush.msra.mxu0 0.0
      %417 = vmatpush.msra.mxu0 0.0
      %418 = vmatpush.msra.mxu0 0.0
      %419 = vmatpush.msra.mxu0 0.0
      %420 = vmatpush.msra.mxu0 0.0
      %421 = vmatpush.msra.mxu0 0.0
      %422 = vmatpush.msra.mxu0 0.0
      %423 = vmatpush.msra.mxu0 0.0
      %424 = vmatpush.msra.mxu0 0.0
      %425 = vmatpush.msra.mxu0 %v384
      %426 = vmatmul.f32.gmra.mxu0 %v388
      %v427 = vpop.f32.mrf.mxu0
      %v428 = vadd.f32 0.0, %v427
      %429 = vdwg.mxu0
      %v430 = vadd.f32 %v372, %v408
      %v431 = vadd.f32 %v373, %v428
      %s432 = scalar_lea.vmem %s0, 32
      %v433 = vld [vmem:[%s432] sm:$0xff]
      %434 = vrot.lane.b32.xlu0 %v209, 64
      %v435 = vpop.permute.xlu0 %434
      %436 = vrot.lane.b32.xlu0 %v210, 64
      %v437 = vpop.permute.xlu0 %436
      %438 = vrot.lane.b32.xlu0 %v211, 64
      %v439 = vpop.permute.xlu0 %438
      %vm440 = vcmask 523264
      %v441 = vsel %vm440, %v435, %v437
      %v442 = vsel %vm440, %v437, %v439
      %v446 = vsel %vm229, %v433, 0
      %448 = vmatpush.msra.mxu0 0.0
      %449 = vmatpush.msra.mxu0 0.0
      %450 = vmatpush.msra.mxu0 0.0
      %451 = vmatpush.msra.mxu0 0.0
      %452 = vmatpush.msra.mxu0 0.0
      %453 = vmatpush.msra.mxu0 0.0
      %454 = vmatpush.msra.mxu0 0.0
      %455 = vmatpush.msra.mxu0 0.0
      %456 = vmatpush.msra.mxu0 0.0
      %457 = vmatpush.msra.mxu0 0.0
      %458 = vmatpush.msra.mxu0 0.0
      %459 = vmatpush.msra.mxu0 0.0
      %460 = vmatpush.msra.mxu0 0.0
      %461 = vmatpush.msra.mxu0 0.0
      %462 = vmatpush.msra.mxu0 0.0
      %463 = vmatpush.msra.mxu0 %v441
      %464 = vmatmul.f32.gmra.mxu0 %v446
      %v465 = vpop.f32.mrf.mxu0
      %v466 = vadd.f32 0.0, %v465
      %467 = vdwg.mxu0
      %468 = vmatpush.msra.mxu0 0.0
      %469 = vmatpush.msra.mxu0 0.0
      %470 = vmatpush.msra.mxu0 0.0
      %471 = vmatpush.msra.mxu0 0.0
      %472 = vmatpush.msra.mxu0 0.0
      %473 = vmatpush.msra.mxu0 0.0
      %474 = vmatpush.msra.mxu0 0.0
      %475 = vmatpush.msra.mxu0 0.0
      %476 = vmatpush.msra.mxu0 0.0
      %477 = vmatpush.msra.mxu0 0.0
      %478 = vmatpush.msra.mxu0 0.0
      %479 = vmatpush.msra.mxu0 0.0
      %480 = vmatpush.msra.mxu0 0.0
      %481 = vmatpush.msra.mxu0 0.0
      %482 = vmatpush.msra.mxu0 0.0
      %483 = vmatpush.msra.mxu0 %v442
      %484 = vmatmul.f32.gmra.mxu0 %v446
      %v485 = vpop.f32.mrf.mxu0
      %v486 = vadd.f32 0.0, %v485
      %487 = vdwg.mxu0
      %v488 = vadd.f32 %v430, %v466
      %v489 = vadd.f32 %v431, %v486
      %s490 = scalar_lea.vmem %s0, 40
      %v491 = vld [vmem:[%s490] sm:$0xff]
      %492 = vrot.lane.b32.xlu0 %v209, 48
      %v493 = vpop.permute.xlu0 %492
      %494 = vrot.lane.b32.xlu0 %v210, 48
      %v495 = vpop.permute.xlu0 %494
      %496 = vrot.lane.b32.xlu0 %v211, 48
      %v497 = vpop.permute.xlu0 %496
      %vm498 = vcmask 392192
      %v499 = vsel %vm498, %v493, %v495
      %v500 = vsel %vm498, %v495, %v497
      %v504 = vsel %vm229, %v491, 0
      %506 = vmatpush.msra.mxu0 0.0
      %507 = vmatpush.msra.mxu0 0.0
      %508 = vmatpush.msra.mxu0 0.0
      %509 = vmatpush.msra.mxu0 0.0
      %510 = vmatpush.msra.mxu0 0.0
      %511 = vmatpush.msra.mxu0 0.0
      %512 = vmatpush.msra.mxu0 0.0
      %513 = vmatpush.msra.mxu0 0.0
      %514 = vmatpush.msra.mxu0 0.0
      %515 = vmatpush.msra.mxu0 0.0
      %516 = vmatpush.msra.mxu0 0.0
      %517 = vmatpush.msra.mxu0 0.0
      %518 = vmatpush.msra.mxu0 0.0
      %519 = vmatpush.msra.mxu0 0.0
      %520 = vmatpush.msra.mxu0 0.0
      %521 = vmatpush.msra.mxu0 %v499
      %522 = vmatmul.f32.gmra.mxu0 %v504
      %v523 = vpop.f32.mrf.mxu0
      %v524 = vadd.f32 0.0, %v523
      %525 = vdwg.mxu0
      %526 = vmatpush.msra.mxu0 0.0
      %527 = vmatpush.msra.mxu0 0.0
      %528 = vmatpush.msra.mxu0 0.0
      %529 = vmatpush.msra.mxu0 0.0
      %530 = vmatpush.msra.mxu0 0.0
      %531 = vmatpush.msra.mxu0 0.0
      %532 = vmatpush.msra.mxu0 0.0
      %533 = vmatpush.msra.mxu0 0.0
      %534 = vmatpush.msra.mxu0 0.0
      %535 = vmatpush.msra.mxu0 0.0
      %536 = vmatpush.msra.mxu0 0.0
      %537 = vmatpush.msra.mxu0 0.0
      %538 = vmatpush.msra.mxu0 0.0
      %539 = vmatpush.msra.mxu0 0.0
      %540 = vmatpush.msra.mxu0 0.0
      %541 = vmatpush.msra.mxu0 %v500
      %542 = vmatmul.f32.gmra.mxu0 %v504
      %v543 = vpop.f32.mrf.mxu0
      %v544 = vadd.f32 0.0, %v543
      %545 = vdwg.mxu0
      %v546 = vadd.f32 %v488, %v524
      %v547 = vadd.f32 %v489, %v544
      %s548 = scalar_lea.vmem %s0, 48
      %v549 = vld [vmem:[%s548] sm:$0xff]
      %550 = vrot.lane.b32.xlu0 %v209, 32
      %v551 = vpop.permute.xlu0 %550
      %552 = vrot.lane.b32.xlu0 %v210, 32
      %v553 = vpop.permute.xlu0 %552
      %554 = vrot.lane.b32.xlu0 %v211, 32
      %v555 = vpop.permute.xlu0 %554
      %vm556 = vcmask 261120
      %v557 = vsel %vm556, %v551, %v553
      %v558 = vsel %vm556, %v553, %v555
      %v562 = vsel %vm229, %v549, 0
      %564 = vmatpush.msra.mxu0 0.0
      %565 = vmatpush.msra.mxu0 0.0
      %566 = vmatpush.msra.mxu0 0.0
      %567 = vmatpush.msra.mxu0 0.0
      %568 = vmatpush.msra.mxu0 0.0
      %569 = vmatpush.msra.mxu0 0.0
      %570 = vmatpush.msra.mxu0 0.0
      %571 = vmatpush.msra.mxu0 0.0
      %572 = vmatpush.msra.mxu0 0.0
      %573 = vmatpush.msra.mxu0 0.0
      %574 = vmatpush.msra.mxu0 0.0
      %575 = vmatpush.msra.mxu0 0.0
      %576 = vmatpush.msra.mxu0 0.0
      %577 = vmatpush.msra.mxu0 0.0
      %578 = vmatpush.msra.mxu0 0.0
      %579 = vmatpush.msra.mxu0 %v557
      %580 = vmatmul.f32.gmra.mxu0 %v562
      %v581 = vpop.f32.mrf.mxu0
      %v582 = vadd.f32 0.0, %v581
      %583 = vdwg.mxu0
      %584 = vmatpush.msra.mxu0 0.0
      %585 = vmatpush.msra.mxu0 0.0
      %586 = vmatpush.msra.mxu0 0.0
      %587 = vmatpush.msra.mxu0 0.0
      %588 = vmatpush.msra.mxu0 0.0
      %589 = vmatpush.msra.mxu0 0.0
      %590 = vmatpush.msra.mxu0 0.0
      %591 = vmatpush.msra.mxu0 0.0
      %592 = vmatpush.msra.mxu0 0.0
      %593 = vmatpush.msra.mxu0 0.0
      %594 = vmatpush.msra.mxu0 0.0
      %595 = vmatpush.msra.mxu0 0.0
      %596 = vmatpush.msra.mxu0 0.0
      %597 = vmatpush.msra.mxu0 0.0
      %598 = vmatpush.msra.mxu0 0.0
      %599 = vmatpush.msra.mxu0 %v558
      %600 = vmatmul.f32.gmra.mxu0 %v562
      %v601 = vpop.f32.mrf.mxu0
      %v602 = vadd.f32 0.0, %v601
      %603 = vdwg.mxu0
      %v604 = vadd.f32 %v546, %v582
      %v605 = vadd.f32 %v547, %v602
      %s606 = scalar_lea.vmem %s0, 56
      %v607 = vld [vmem:[%s606] sm:$0xff]
      %608 = vrot.lane.b32.xlu0 %v209, 16
      %v609 = vpop.permute.xlu0 %608
      %610 = vrot.lane.b32.xlu0 %v210, 16
      %v611 = vpop.permute.xlu0 %610
      %612 = vrot.lane.b32.xlu0 %v211, 16
      %v613 = vpop.permute.xlu0 %612
      %vm614 = vcmask 130048
      %v615 = vsel %vm614, %v609, %v611
      %v616 = vsel %vm614, %v611, %v613
      %v620 = vsel %vm229, %v607, 0
      %622 = vmatpush.msra.mxu0 0.0
      %623 = vmatpush.msra.mxu0 0.0
      %624 = vmatpush.msra.mxu0 0.0
      %625 = vmatpush.msra.mxu0 0.0
      %626 = vmatpush.msra.mxu0 0.0
      %627 = vmatpush.msra.mxu0 0.0
      %628 = vmatpush.msra.mxu0 0.0
      %629 = vmatpush.msra.mxu0 0.0
      %630 = vmatpush.msra.mxu0 0.0
      %631 = vmatpush.msra.mxu0 0.0
      %632 = vmatpush.msra.mxu0 0.0
      %633 = vmatpush.msra.mxu0 0.0
      %634 = vmatpush.msra.mxu0 0.0
      %635 = vmatpush.msra.mxu0 0.0
      %636 = vmatpush.msra.mxu0 0.0
      %637 = vmatpush.msra.mxu0 %v615
      %638 = vmatmul.f32.gmra.mxu0 %v620
      %v639 = vpop.f32.mrf.mxu0
      %v640 = vadd.f32 0.0, %v639
      %641 = vdwg.mxu0
      %642 = vmatpush.msra.mxu0 0.0
      %643 = vmatpush.msra.mxu0 0.0
      %644 = vmatpush.msra.mxu0 0.0
      %645 = vmatpush.msra.mxu0 0.0
      %646 = vmatpush.msra.mxu0 0.0
      %647 = vmatpush.msra.mxu0 0.0
      %648 = vmatpush.msra.mxu0 0.0
      %649 = vmatpush.msra.mxu0 0.0
      %650 = vmatpush.msra.mxu0 0.0
      %651 = vmatpush.msra.mxu0 0.0
      %652 = vmatpush.msra.mxu0 0.0
      %653 = vmatpush.msra.mxu0 0.0
      %654 = vmatpush.msra.mxu0 0.0
      %655 = vmatpush.msra.mxu0 0.0
      %656 = vmatpush.msra.mxu0 0.0
      %657 = vmatpush.msra.mxu0 %v616
      %658 = vmatmul.f32.gmra.mxu0 %v620
      %v659 = vpop.f32.mrf.mxu0
      %v660 = vadd.f32 0.0, %v659
      %661 = vdwg.mxu0
      %v662 = vadd.f32 %v604, %v640
      %v663 = vadd.f32 %v605, %v660
      %s664 = scalar_lea.vmem %s0, 64
      %v665 = vld [vmem:[%s664] sm:$0xff]
      %v667 = vsel %vm229, %v665, 0
      %669 = vmatpush.msra.mxu0 0.0
      %670 = vmatpush.msra.mxu0 0.0
      %671 = vmatpush.msra.mxu0 0.0
      %672 = vmatpush.msra.mxu0 0.0
      %673 = vmatpush.msra.mxu0 0.0
      %674 = vmatpush.msra.mxu0 0.0
      %675 = vmatpush.msra.mxu0 0.0
      %676 = vmatpush.msra.mxu0 0.0
      %677 = vmatpush.msra.mxu0 0.0
      %678 = vmatpush.msra.mxu0 0.0
      %679 = vmatpush.msra.mxu0 0.0
      %680 = vmatpush.msra.mxu0 0.0
      %681 = vmatpush.msra.mxu0 0.0
      %682 = vmatpush.msra.mxu0 0.0
      %683 = vmatpush.msra.mxu0 0.0
      %684 = vmatpush.msra.mxu0 %v210
      %685 = vmatmul.f32.gmra.mxu0 %v667
      %v686 = vpop.f32.mrf.mxu0
      %v687 = vadd.f32 0.0, %v686
      %688 = vdwg.mxu0
      %689 = vmatpush.msra.mxu0 0.0
      %690 = vmatpush.msra.mxu0 0.0
      %691 = vmatpush.msra.mxu0 0.0
      %692 = vmatpush.msra.mxu0 0.0
      %693 = vmatpush.msra.mxu0 0.0
      %694 = vmatpush.msra.mxu0 0.0
      %695 = vmatpush.msra.mxu0 0.0
      %696 = vmatpush.msra.mxu0 0.0
      %697 = vmatpush.msra.mxu0 0.0
      %698 = vmatpush.msra.mxu0 0.0
      %699 = vmatpush.msra.mxu0 0.0
      %700 = vmatpush.msra.mxu0 0.0
      %701 = vmatpush.msra.mxu0 0.0
      %702 = vmatpush.msra.mxu0 0.0
      %703 = vmatpush.msra.mxu0 0.0
      %704 = vmatpush.msra.mxu0 %v211
      %705 = vmatmul.f32.gmra.mxu0 %v667
      %v706 = vpop.f32.mrf.mxu0
      %v707 = vadd.f32 0.0, %v706
      %708 = vdwg.mxu0
      %v709 = vadd.f32 %v662, %v687
      %v710 = vadd.f32 %v663, %v707
      %v711 = vld [vmem:[%s1] sm:$0xff]
      %713 = vset.pattern.permute.xlu0 0
      %714 = vperm.xlu0 %713, %v711
      %v715 = vpop.permute.xlu0 %714
      %v717 = vadd.f32 %v709, %v715
      %v718 = vadd.f32 %v710, %v715
      %719 = vst [vmem:[%s204] sm:$0xff] %v717
      %720 = vst [vmem:[%s204 + $0x8] sm:$0xff] %v718
      %v721 = vadd.f32 %v717, %v718
      %722 = vadd.xlane.f32.xlu0 %v721
      %v723 = vpop.xlane.xlu0 %722
      %v724 = vmul.f32 %v717, %v717
      %v725 = vmul.f32 %v718, %v718
      %v726 = vadd.f32 %v724, %v725
      %727 = vadd.xlane.f32.xlu0 %v726
      %v728 = vpop.xlane.xlu0 %727
      %vm729 = vcmask 7168
      %v730 = vsel %vm729, %v723, %v728
      %vm731 = vcmask 15360
      %732 = vst.msk [vmem:[%s208] sm:$0xff] %vm731, %v730
      %p733 = scmp.lt.s32.totalorder %s16, 1
      %s734 = scalar_select %p733, %s16, 1
      %s735 = smul.addr %s734, 2
      %s736 = smul.addr %s735, 8
      %s737 = scalar_lea.vmem %s3, %s736
      %p738 = scmp.lt.s32.totalorder %s16, 1
      %s739 = scalar_select %p738, %s16, 1
      %s740 = smul.addr %s739, 8
      %s741 = scalar_lea.vmem %s4, %s740
      // Predicated region
      $region33: #{unit_tcn_forward.2} parent=31 // pred_check
        %p742 = pneg %p102
      $region34: #{unit_tcn_forward.2} parent=31 // pred_check_branch
        %744 = sbr.rel (%p742) target = $region36
      $region35: #{unit_tcn_forward.2} parent=31 // pred_region
        _
      $region36: #{unit_tcn_forward.2} parent=31 // pred_fallthru
        _
      // Predicated region
      $region37: #{unit_tcn_forward.2} parent=31 // pred_check
        %p745 = pneg %p128
      $region38: #{unit_tcn_forward.2} parent=31 // pred_check_branch
        %747 = sbr.rel (%p745) target = $region40
      $region39: #{unit_tcn_forward.2} parent=31 // pred_region
        _
      $region40: #{unit_tcn_forward.2} parent=31 // pred_fallthru
        _
    $region32: #{unit_tcn_forward.2} parent=5 // pred_fallthru
      _
    %p748 = scmp.le.s32.totalorder 2, %s11
    // Predicated region
    $region41: #{unit_tcn_forward.2} parent=5 // pred_check
      %p749 = pneg %p748
    $region42: #{unit_tcn_forward.2} parent=5 // pred_check_branch
      %751 = sbr.rel (%p749) target = $region44
    $region43: #{unit_tcn_forward.2} parent=5 // pred_region
      %s752 = ssub.s32 %s11, 2
      // Predicated region
      $region45: #{unit_tcn_forward.2} parent=43 // pred_check
        %p753 = pneg %p108
      $region46: #{unit_tcn_forward.2} parent=43 // pred_check_branch
        %755 = sbr.rel (%p753) target = $region48
      $region47: #{unit_tcn_forward.2} parent=43 // pred_region
        %p756 = scmp.lt.s32.totalorder %s17, 1
        %s757 = scalar_select %p756, %s17, 1
        %s758 = smul.addr %s757, 2
        %s759 = smul.addr %s758, 8
        %s760 = scalar_lea.vmem %s3, %s759
      $region48: #{unit_tcn_forward.2} parent=43 // pred_fallthru
        _
      // Predicated region
      $region49: #{unit_tcn_forward.2} parent=43 // pred_check
        %p761 = pneg %p134
      $region50: #{unit_tcn_forward.2} parent=43 // pred_check_branch
        %763 = sbr.rel (%p761) target = $region52
      $region51: #{unit_tcn_forward.2} parent=43 // pred_region
        %p764 = scmp.lt.s32.totalorder %s17, 1
        %s765 = scalar_select %p764, %s17, 1
        %s766 = smul.addr %s765, 8
        %s767 = scalar_lea.vmem %s4, %s766
      $region52: #{unit_tcn_forward.2} parent=43 // pred_fallthru
        _
    $region44: #{unit_tcn_forward.2} parent=5 // pred_fallthru
      _
  $region6: #{unit_tcn_forward.2} parent=0 // loop_footer
    %s15 = sadd.s32 1, %s11
  $region7: #{unit_tcn_forward.2} parent=0 // loop_footer_branch
    %10 = sbr.rel target = $region3
  $region8: #{unit_tcn_forward.2} parent=0 // loop_exit
    _

</llo_original>
